<compile_context>
chip_gen: v6e
topology: v6e:2x2x1
jax: 0.10.0
libtpu: 0.0.40
codegen_flags: <defaults>
</compile_context>

<pallas_src>
import functools

import jax
import jax.numpy as jnp
from jax import lax
from jax.experimental import pallas as pl
from jax.experimental.pallas import tpu as pltpu

HIDDEN = 50        # PyTorch hidden width
HIDDEN_PAD = 128   # zero-padded hidden width (exact padding, full 128-lane tiles)

_VMEM_BUDGET_BYTES = 12 * 1024 * 1024   # stay under every chip's default scoped VMEM


def _round_up(x: int, m: int) -> int:
    return ((x + m - 1) // m) * m


@functools.lru_cache(maxsize=1)
def _device_kind() -> str:
    try:
        return jax.devices()[0].device_kind.lower()
    except Exception:
        return ""


def _has_two_tensorcores() -> bool:
    # v4 (megacore) and v7x have 2 TensorCores per chip; v5e/v6e have 1.
    kind = _device_kind()
    return any(t in kind for t in ("v4", "v5p", "v7", "7x"))


def _has_bf16_eup() -> bool:
    # bf16 VPU/EUP exists on v6e and v7x; v5e would only pay for extra casts.
    kind = _device_kind()
    return any(t in kind for t in ("v6", "v7", "7x"))


def _disc_kernel(x_ref, w1_ref, b1_ref, w2_ref, b2_ref, w3t_ref, b3_ref, out_ref,
                 *, act_dtype):
    """Fused MLP forward for one batch tile.

    x_ref   : (TB, IN)     w1_ref : (IN, HP)    b1_ref : (1, HP)
    w2_ref  : (HP, HP)     b2_ref : (1, HP)
    w3t_ref : (1, HP)      b3_ref : (1, 1) scalar in SMEM
    out_ref : (1, 1, TB)   sigmoid output, batch along the 128-lane dim
    """
    x = x_ref[...]
    z1 = jnp.dot(x, w1_ref[...], preferred_element_type=jnp.float32) + b1_ref[...]
    h1 = jnp.tanh(z1.astype(act_dtype)).astype(jnp.float32)   # EUP (bf16 on v6e/v7x)
    z2 = jnp.dot(h1, w2_ref[...], preferred_element_type=jnp.float32) + b2_ref[...]
    h2 = jnp.tanh(z2.astype(act_dtype)).astype(jnp.float32)
    # Contract over HP directly: (1,HP) x (TB,HP) -> (1,TB). Mosaic folds the rhs
    # transpose into the MXU operand feed; no explicit (HP,TB) XLU transpose of h2.
    z3 = lax.dot_general(
        w3t_ref[...], h2,
        dimension_numbers=(((1,), (1,)), ((), ())),
        preferred_element_type=jnp.float32,
    )
    out_ref[0, :, :] = jax.nn.sigmoid(z3 + b3_ref[0, 0])


def _choose_tile(B: int, IN: int, HP: int, batch_tile: int):
    # Bucket B to the next power of two (>= 8) so tile/num_tiles come from a small
    # fixed set -> stable shapes, no recompiles in a training loop.
    b_bucket = max(8, int(pl.next_power_of_2(max(int(B), 1))))
    tile = _round_up(min(int(batch_tile), b_bucket), 8)

    # Cap the tile so double-buffered x + the f32 h1/h2 temporaries fit comfortably
    # under every chip's default scoped VMEM (v5e is only 16 MiB), even for large IN.
    def vmem_est(t: int) -> int:
        x_bytes = 2 * t * IN * 4               # double-buffered input tile
        inter = 2 * t * HP * 4                 # h1 + h2 f32 temporaries
        w_bytes = 2 * (IN * HP + HP * HP + 3 * HP) * 4
        out_bytes = 2 * 2 * t * 4
        return x_bytes + inter + w_bytes + out_bytes

    while tile > 256 and vmem_est(tile) > _VMEM_BUDGET_BYTES:
        tile = _round_up(tile // 2, 8)

    # Split into >=2 grid steps only on dual-TensorCore parts, where the "parallel"
    # batch axis shards across cores; on single-TC chips an extra grid step is pure
    # serial ~0.35us overhead for zero parallelism.
    if _has_two_tensorcores() and pl.cdiv(b_bucket, tile) < 2 and tile >= 16:
        tile = _round_up(tile // 2, 8)

    num_tiles = pl.cdiv(b_bucket, tile)
    return tile, num_tiles


def discriminator_forward(x, packed_params, *, batch_tile=2048, use_bf16_act=None):
    """Fused DiscriminatorNet forward. x: (B, input_size) float32 -> (B, 1) float32."""
    x = jnp.asarray(x, jnp.float32)
    B, IN = x.shape
    w1, b1 = packed_params["w1"], packed_params["b1"]      # (IN, HP), (1, HP)
    w2, b2 = packed_params["w2"], packed_params["b2"]      # (HP, HP), (1, HP)
    w3t, b3 = packed_params["w3t"], packed_params["b3"]    # (1, HP),  (1, 1)
    HP = w1.shape[1]

    if use_bf16_act is None:
        use_bf16_act = _has_bf16_eup()
    act_dtype = jnp.bfloat16 if use_bf16_act else jnp.float32

    tile, num_tiles = _choose_tile(B, IN, HP, batch_tile)
    b_pad = num_tiles * tile
    if b_pad != B:  # ragged batch: zero-pad, slice the result back afterwards
        x = jnp.pad(x, ((0, b_pad - B), (0, 0)))

    cost = pl.CostEstimate(
        flops=2 * b_pad * HP * (IN + HP + 1),
        transcendentals=b_pad * (2 * HP + 1),      # tanh x2 + sigmoid per row
        bytes_accessed=4 * (b_pad * IN + IN * HP + HP * HP + 3 * HP + 1 + b_pad),
    )

    out = pl.pallas_call(
        functools.partial(_disc_kernel, act_dtype=act_dtype),
        out_shape=jax.ShapeDtypeStruct((num_tiles, 1, tile), jnp.float32),
        grid_spec=pltpu.PrefetchScalarGridSpec(
            num_scalar_prefetch=0,
            grid=(num_tiles,),
            in_specs=[
                pl.BlockSpec((tile, IN), lambda i: (i, 0)),
                # Weights/biases are grid-invariant -> DMA'd once and reused.
                pl.BlockSpec((IN, HP), lambda i: (0, 0)),
                pl.BlockSpec((1, HP), lambda i: (0, 0)),
                pl.BlockSpec((HP, HP), lambda i: (0, 0)),
                pl.BlockSpec((1, HP), lambda i: (0, 0)),
                pl.BlockSpec((1, HP), lambda i: (0, 0)),
                pl.BlockSpec(memory_space=pltpu.MemorySpace.SMEM),   # b3 scalar
            ],
            out_specs=pl.BlockSpec((1, 1, tile), lambda i: (i, 0, 0)),
        ),
        compiler_params=pltpu.CompilerParams(
            dimension_semantics=("parallel",),
            vmem_limit_bytes=32 * 1024 * 1024,
        ),
        cost_estimate=cost,
    )(x, w1, b1, w2, b2, w3t, b3)

    # (num_tiles, 1, tile) row-major is exactly batch order -> back to (B, 1).
    return out.reshape(b_pad, 1)[:B]


def init_params(key, input_size):
    """PyTorch-style init U(-1/sqrt(fan_in), 1/sqrt(fan_in)), (in, out) weight layout."""
    def linear(k, fan_in, fan_out):
        kw, kb = jax.random.split(k)
        bound = 1.0 / jnp.sqrt(jnp.float32(fan_in))
        w = jax.random.uniform(kw, (fan_in, fan_out), jnp.float32, -bound, bound)
        b = jax.random.uniform(kb, (1, fan_out), jnp.float32, -bound, bound)
        return w, b

    k1, k2, k3 = jax.random.split(key, 3)
    w1, b1 = linear(k1, input_size, HIDDEN)
    w2, b2 = linear(k2, HIDDEN, HIDDEN)
    w3, b3 = linear(k3, HIDDEN, 1)
    return {"w1": w1, "b1": b1, "w2": w2, "b2": b2, "w3": w3, "b3": b3}


def pack_params(p, hidden_pad=HIDDEN_PAD):
    """Zero-pad hidden width 50 -> 128 (bit-exact result) and pre-transpose layer 3."""
    h = p["w1"].shape[1]
    ph = hidden_pad - h
    assert ph >= 0
    return {
        "w1": jnp.pad(p["w1"], ((0, 0), (0, ph))),     # (IN, HP)
        "b1": jnp.pad(p["b1"], ((0, 0), (0, ph))),     # (1, HP)
        "w2": jnp.pad(p["w2"], ((0, ph), (0, ph))),    # (HP, HP)
        "b2": jnp.pad(p["b2"], ((0, 0), (0, ph))),     # (1, HP)
        "w3t": jnp.pad(p["w3"].T, ((0, 0), (0, ph))),  # (1, HP)
        "b3": p["b3"],                                 # (1, 1)
    }


def reference_forward(x, p):
    h1 = jnp.tanh(x @ p["w1"] + p["b1"])
    h2 = jnp.tanh(h1 @ p["w2"] + p["b2"])
    return jax.nn.sigmoid(h2 @ p["w3"] + p["b3"])


if __name__ == "__main__":
    key = jax.random.PRNGKey(0)
    kx, kp = jax.random.split(key)

    input_size = 32
    params = init_params(kp, input_size)
    packed = pack_params(params)

    # 1) Small batch, forced f32 activations: tight check against the reference.
    x = jax.random.normal(kx, (16, input_size), jnp.float32)
    out = jax.block_until_ready(discriminator_forward(x, packed, use_bf16_act=False))
    ref = reference_forward(x, params)
    assert out.shape == (16, 1)
    assert jnp.allclose(out, ref, atol=1e-5, rtol=1e-5), "mismatch (batch=16, f32)"

    # 2) Ragged batch (13 rows): zero-pad + slice path, same bucketed shapes as (1).
    x13 = jax.random.normal(jax.random.PRNGKey(1), (13, input_size), jnp.float32)
    out13 = jax.block_until_ready(discriminator_forward(x13, packed, use_bf16_act=False))
    assert out13.shape == (13, 1)
    assert jnp.allclose(out13, reference_forward(x13, params), atol=1e-5, rtol=1e-5), \
        "mismatch (batch=13, f32)"

    # 3) Larger batch, auto precision (bf16 tanh on v6e/v7x): big-tile path.
    x1k = jax.random.normal(jax.random.PRNGKey(2), (1000, input_size), jnp.float32)
    out1k = jax.block_until_ready(discriminator_forward(x1k, packed))
    assert out1k.shape == (1000, 1)
    assert jnp.allclose(out1k, reference_forward(x1k, params), atol=2e-2, rtol=2e-2), \
        "mismatch (batch=1000, auto precision)"

    print("KERNEL_OK")
</pallas_src>

<mosaic_0001>
module attributes {stable_mosaic.version = 11 : i64} {
  func.func @_disc_kernel(%arg0: i32, %arg1: memref<16x32xf32, #tpu.memory_space<vmem>>, %arg2: memref<32x128xf32, #tpu.memory_space<vmem>>, %arg3: memref<1x128xf32, #tpu.memory_space<vmem>>, %arg4: memref<128x128xf32, #tpu.memory_space<vmem>>, %arg5: memref<1x128xf32, #tpu.memory_space<vmem>>, %arg6: memref<1x128xf32, #tpu.memory_space<vmem>>, %arg7: memref<1x1xf32, #tpu.memory_space<smem>>, %arg8: memref<1x1x16xf32, #tpu.memory_space<vmem>>) attributes {dimension_semantics = [#tpu.dimension_semantics<parallel>], iteration_bounds = array<i64: 1>, scalar_prefetch = 0 : i64, scratch_operands = 0 : i64, tpu.core_type = #tpu.core_type<tc>, window_params = [{transform_indices = @transform_0, window_bounds = array<i64: 16, 32>}, {pipeline_mode = #tpu.pipeline_mode<synchronous>, transform_indices = @transform_1, window_bounds = array<i64: 32, 128>}, {pipeline_mode = #tpu.pipeline_mode<synchronous>, transform_indices = @transform_2, window_bounds = array<i64: 1, 128>}, {pipeline_mode = #tpu.pipeline_mode<synchronous>, transform_indices = @transform_3, window_bounds = array<i64: 128, 128>}, {pipeline_mode = #tpu.pipeline_mode<synchronous>, transform_indices = @transform_4, window_bounds = array<i64: 1, 128>}, {pipeline_mode = #tpu.pipeline_mode<synchronous>, transform_indices = @transform_5, window_bounds = array<i64: 1, 128>}, {transform_indices = @transform_6, window_bounds = array<i64: 1, 1>}, {transform_indices = @transform_7, window_bounds = array<i64: 1, 1, 16>}]} {
    %c0 = arith.constant 0 : index
    %c0_0 = arith.constant 0 : index
    %0 = vector.load %arg1[%c0, %c0_0] : memref<16x32xf32, #tpu.memory_space<vmem>>, vector<16x32xf32>
    %c0_1 = arith.constant 0 : index
    %c0_2 = arith.constant 0 : index
    %1 = vector.load %arg2[%c0_1, %c0_2] : memref<32x128xf32, #tpu.memory_space<vmem>>, vector<32x128xf32>
    %cst = arith.constant dense<0.000000e+00> : vector<16x128xf32>
    %2 = tpu.matmul %0, %1, %cst {dimension_numbers = #tpu.dot_dimension_numbers<[1], [0], [0], [1], [0, 0, 1, 1], [], []>} : vector<16x32xf32>, vector<32x128xf32>, vector<16x128xf32> -> vector<16x128xf32>
    %c0_3 = arith.constant 0 : index
    %c0_4 = arith.constant 0 : index
    %3 = vector.load %arg3[%c0_3, %c0_4] : memref<1x128xf32, #tpu.memory_space<vmem>>, vector<1x128xf32>
    %4 = vector.broadcast %3 : vector<1x128xf32> to vector<16x128xf32>
    %5 = arith.addf %2, %4 : vector<16x128xf32>
    %6 = math.tanh %5 : vector<16x128xf32>
    %c0_5 = arith.constant 0 : index
    %c0_6 = arith.constant 0 : index
    %7 = vector.load %arg4[%c0_5, %c0_6] : memref<128x128xf32, #tpu.memory_space<vmem>>, vector<128x128xf32>
    %cst_7 = arith.constant dense<0.000000e+00> : vector<16x128xf32>
    %8 = tpu.matmul %6, %7, %cst_7 {dimension_numbers = #tpu.dot_dimension_numbers<[1], [0], [0], [1], [0, 0, 1, 1], [], []>} : vector<16x128xf32>, vector<128x128xf32>, vector<16x128xf32> -> vector<16x128xf32>
    %c0_8 = arith.constant 0 : index
    %c0_9 = arith.constant 0 : index
    %9 = vector.load %arg5[%c0_8, %c0_9] : memref<1x128xf32, #tpu.memory_space<vmem>>, vector<1x128xf32>
    %10 = vector.broadcast %9 : vector<1x128xf32> to vector<16x128xf32>
    %11 = arith.addf %8, %10 : vector<16x128xf32>
    %12 = math.tanh %11 : vector<16x128xf32>
    %c0_10 = arith.constant 0 : index
    %c0_11 = arith.constant 0 : index
    %13 = vector.load %arg6[%c0_10, %c0_11] : memref<1x128xf32, #tpu.memory_space<vmem>>, vector<1x128xf32>
    %cst_12 = arith.constant dense<0.000000e+00> : vector<1x16xf32>
    %14 = tpu.matmul %13, %12, %cst_12 {dimension_numbers = #tpu.dot_dimension_numbers<[1], [1], [0], [0], [0, 0, 1, 0], [], []>} : vector<1x128xf32>, vector<16x128xf32>, vector<1x16xf32> -> vector<1x16xf32>
    %c0_13 = arith.constant 0 : index
    %c0_14 = arith.constant 0 : index
    %15 = memref.load %arg7[%c0_13, %c0_14] : memref<1x1xf32, #tpu.memory_space<smem>>
    %16 = vector.broadcast %15 : f32 to vector<1x16xf32>
    %17 = arith.addf %14, %16 : vector<1x16xf32>
    %18 = arith.negf %17 : vector<1x16xf32>
    %19 = math.exp %18 : vector<1x16xf32>
    %cst_15 = arith.constant 1.000000e+00 : f32
    %20 = vector.broadcast %cst_15 : f32 to vector<1x16xf32>
    %21 = arith.addf %20, %19 : vector<1x16xf32>
    %22 = arith.divf %20, %21 : vector<1x16xf32>
    %c0_16 = arith.constant 0 : index
    %c0_17 = arith.constant 0 : index
    %c0_18 = arith.constant 0 : index
    %23 = vector.load %arg8[%c0_16, %c0_17, %c0_18] : memref<1x1x16xf32, #tpu.memory_space<vmem>>, vector<1x1x16xf32>
    %24 = vector.shape_cast %23 : vector<1x1x16xf32> to vector<1x16xf32>
    %25 = vector.shape_cast %22 : vector<1x16xf32> to vector<1x1x16xf32>
    tpu.vector_store %arg8[%c0_16, %c0_17, %c0_18], %25 {strides = array<i32>} : memref<1x1x16xf32, #tpu.memory_space<vmem>>, vector<1x1x16xf32>,
    return
  }
  func.func @transform_0(%arg0: i32) -> (i32, i32) {
    %c0_i32 = arith.constant 0 : i32
    %c0_i32_0 = arith.constant 0 : i32
    return %arg0, %c0_i32 : i32, i32
  }
  func.func @transform_1(%arg0: i32) -> (i32, i32) {
    %c0_i32 = arith.constant 0 : i32
    %c0_i32_0 = arith.constant 0 : i32
    %c0_i32_1 = arith.constant 0 : i32
    return %c0_i32, %c0_i32_0 : i32, i32
  }
  func.func @transform_2(%arg0: i32) -> (i32, i32) {
    %c0_i32 = arith.constant 0 : i32
    %c0_i32_0 = arith.constant 0 : i32
    %c0_i32_1 = arith.constant 0 : i32
    return %c0_i32, %c0_i32_0 : i32, i32
  }
  func.func @transform_3(%arg0: i32) -> (i32, i32) {
    %c0_i32 = arith.constant 0 : i32
    %c0_i32_0 = arith.constant 0 : i32
    %c0_i32_1 = arith.constant 0 : i32
    return %c0_i32, %c0_i32_0 : i32, i32
  }
  func.func @transform_4(%arg0: i32) -> (i32, i32) {
    %c0_i32 = arith.constant 0 : i32
    %c0_i32_0 = arith.constant 0 : i32
    %c0_i32_1 = arith.constant 0 : i32
    return %c0_i32, %c0_i32_0 : i32, i32
  }
  func.func @transform_5(%arg0: i32) -> (i32, i32) {
    %c0_i32 = arith.constant 0 : i32
    %c0_i32_0 = arith.constant 0 : i32
    %c0_i32_1 = arith.constant 0 : i32
    return %c0_i32, %c0_i32_0 : i32, i32
  }
  func.func @transform_6(%arg0: i32) -> (i32, i32) {
    %c0_i32 = arith.constant 0 : i32
    %c0_i32_0 = arith.constant 0 : i32
    %c0_i32_1 = arith.constant 0 : i32
    return %c0_i32, %c0_i32_0 : i32, i32
  }
  func.func @transform_7(%arg0: i32) -> (i32, i32, i32) {
    %c0_i32 = arith.constant 0 : i32
    %c0_i32_0 = arith.constant 0 : i32
    %c0_i32_1 = arith.constant 0 : i32
    return %arg0, %c0_i32, %c0_i32_0 : i32, i32, i32
  }
}

</mosaic_0001>

<llo_original>
// kernel: tpu_custom_call.1
$region0: #{tpu_custom_call.1}
  #allocation0 [shape = 'u32[]', space=smem, size = 0x4, offset = 0x4, fixed_abs, tag = 'smem constant byte address 0x4 - core index']
  #allocation1 [shape = 'u32[144,128]{1,0:T(1,128)}', space=vmem, size = 0x12000, scoped, tag = 'internal scratch']
  #allocation2 [shape = 'f32[1,1]{1,0:T(1,128)S(6)}', space=smem, size = 0x200, scoped, tag = 'scoped memory for tpu_custom_call.1']
  %s0 = inlined_call_operand.hbm [shape: f32[16,32], index: 0, kind: input, shape index: {}]
  %s1 = inlined_call_operand.hbm [shape: f32[32,128], index: 1, kind: input, shape index: {}]
  %s2 = inlined_call_operand.vmem [shape: f32[1,128], index: 2, kind: input, shape index: {}]
  %s3 = inlined_call_operand.hbm [shape: f32[128,128], index: 3, kind: input, shape index: {}]
  %s4 = inlined_call_operand.vmem [shape: f32[1,128], index: 4, kind: input, shape index: {}]
  %s5 = inlined_call_operand.vmem [shape: f32[1,128], index: 5, kind: input, shape index: {}]
  %s6 = inlined_call_operand.<no memory space> [shape: f32[1,1], index: 6, kind: input, shape index: {}]
  %s7 = inlined_call_operand.hbm [shape: f32[1,1,16], index: 7, kind: output, shape index: {}]
  %s8 = sld [smem:[#allocation0]]
  $region50: #{tpu_custom_call.1} parent=0
    _
  %s10 = ssub.s32 1, %s8
  %s11 = scalar_select 0, %s10, %s8
  %12 = sst [smem:[#allocation2]] %s6
  $region1: #{tpu_custom_call.1} parent=0
    #allocation3 [shape = 'u8[8192]{0}', space=vmem, size = 0x2000, scoped, tag = 'input window, operand 0, single buffered']
    #allocation4 [shape = 's32[1]{0}', space=sflag, size = 0x4, scoped, tag = 'scoped memory for tpu_custom_call.1']
    #allocation5 [shape = 's32[1]{0}', space=sflag, size = 0x4, scoped, tag = 'scoped memory for tpu_custom_call.1']
    #allocation6 [shape = 'u8[16384]{0}', space=vmem, size = 0x4000, scoped, tag = 'input window, operand 1, single buffered']
    #allocation7 [shape = 's32[1]{0}', space=sflag, size = 0x4, scoped, tag = 'scoped memory for tpu_custom_call.1']
    #allocation8 [shape = 'u8[65536]{0}', space=vmem, size = 0x10000, scoped, tag = 'input window, operand 3, single buffered']
    #allocation9 [shape = 'u8[512]{0}', space=vmem, size = 0x400, scoped, tag = 'output window, operand 0, single buffered']
    %13 = vsyncpa [#allocation4], 0
    %14 = vsyncpa [#allocation7], 0
    %15 = vsyncpa [#allocation5], 0
    // Predicated region
    $region2: #{tpu_custom_call.1} parent=1 // pred_check
      _
    $region3: #{tpu_custom_call.1} parent=1 // pred_check_branch
      %17 = sbr.rel (0) target = $region5
    $region4: #{tpu_custom_call.1} parent=1 // pred_region
      %s19 = ssub.s32 256, 256
      %20 = vsyncadd [#allocation4], %s19
      %s21 = sshll.u32 [#allocation3], 4
      %s22 = int_to_ptr.vmem [resolvable:$true] %s21
      %27 = dma.hbm_to_vmem [thread:$0]  %s0, 256, %s22, [#allocation4], 128, 128, 8
    $region5: #{tpu_custom_call.1} parent=1 // pred_fallthru
      _
    // Predicated region
    $region6: #{tpu_custom_call.1} parent=1 // pred_check
      _
    $region7: #{tpu_custom_call.1} parent=1 // pred_check_branch
      %29 = sbr.rel (0) target = $region9
    $region8: #{tpu_custom_call.1} parent=1 // pred_region
      %s31 = ssub.s32 512, 512
      %32 = vsyncadd [#allocation7], %s31
      %s33 = sshll.u32 [#allocation6], 4
      %s34 = int_to_ptr.vmem [resolvable:$true] %s33
      %39 = dma.hbm_to_vmem [thread:$0]  %s1, 512, %s34, [#allocation7], 128, 128, 8
    $region9: #{tpu_custom_call.1} parent=1 // pred_fallthru
      _
    // Predicated region
    $region10: #{tpu_custom_call.1} parent=1 // pred_check
      _
    $region11: #{tpu_custom_call.1} parent=1 // pred_check_branch
      %41 = sbr.rel (0) target = $region13
    $region12: #{tpu_custom_call.1} parent=1 // pred_region
      _
    $region13: #{tpu_custom_call.1} parent=1 // pred_fallthru
      _
    // Predicated region
    $region14: #{tpu_custom_call.1} parent=1 // pred_check
      _
    $region15: #{tpu_custom_call.1} parent=1 // pred_check_branch
      %43 = sbr.rel (0) target = $region17
    $region16: #{tpu_custom_call.1} parent=1 // pred_region
      %s45 = ssub.s32 2048, 2048
      %46 = vsyncadd [#allocation7], %s45
      %s47 = sshll.u32 [#allocation8], 4
      %s48 = int_to_ptr.vmem [resolvable:$true] %s47
      %53 = dma.hbm_to_vmem [thread:$0]  %s3, 2048, %s48, [#allocation7], 128, 128, 8
    $region17: #{tpu_custom_call.1} parent=1 // pred_fallthru
      _
    // Predicated region
    $region18: #{tpu_custom_call.1} parent=1 // pred_check
      _
    $region19: #{tpu_custom_call.1} parent=1 // pred_check_branch
      %55 = sbr.rel (0) target = $region21
    $region20: #{tpu_custom_call.1} parent=1 // pred_region
      _
    $region21: #{tpu_custom_call.1} parent=1 // pred_fallthru
      _
    // Predicated region
    $region22: #{tpu_custom_call.1} parent=1 // pred_check
      _
    $region23: #{tpu_custom_call.1} parent=1 // pred_check_branch
      %57 = sbr.rel (0) target = $region25
    $region24: #{tpu_custom_call.1} parent=1 // pred_region
      _
    $region25: #{tpu_custom_call.1} parent=1 // pred_fallthru
      _
    // Predicated region
    $region26: #{tpu_custom_call.1} parent=1 // pred_check
      _
    $region27: #{tpu_custom_call.1} parent=1 // pred_check_branch
      %59 = sbr.rel (0) target = $region29
    $region28: #{tpu_custom_call.1} parent=1 // pred_region
      _
    $region29: #{tpu_custom_call.1} parent=1 // pred_fallthru
      _
    // Predicated region
    $region30: #{tpu_custom_call.1} parent=1 // pred_check
      _
    $region31: #{tpu_custom_call.1} parent=1 // pred_check_branch
      %61 = sbr.rel (0) target = $region33
    $region32: #{tpu_custom_call.1} parent=1 // pred_region
      %62 = dma.done [#allocation4], 256
    $region33: #{tpu_custom_call.1} parent=1 // pred_fallthru
      _
    // Predicated region
    $region34: #{tpu_custom_call.1} parent=1 // pred_check
      _
    $region35: #{tpu_custom_call.1} parent=1 // pred_check_branch
      %64 = sbr.rel (0) target = $region37
    $region36: #{tpu_custom_call.1} parent=1 // pred_region
      %65 = dma.done [#allocation7], 512
    $region37: #{tpu_custom_call.1} parent=1 // pred_fallthru
      _
    // Predicated region
    $region38: #{tpu_custom_call.1} parent=1 // pred_check
      _
    $region39: #{tpu_custom_call.1} parent=1 // pred_check_branch
      %67 = sbr.rel (0) target = $region41
    $region40: #{tpu_custom_call.1} parent=1 // pred_region
      %68 = dma.done [#allocation7], 2048
    $region41: #{tpu_custom_call.1} parent=1 // pred_fallthru
      _
    %v69 = vld [vmem:[#allocation3] sm:$0xff]
    %v70 = vld [vmem:[#allocation3 + $0x8] sm:$0xff]
    %v71 = vld [vmem:[#allocation6] sm:$0xff]
    %v72 = vld [vmem:[#allocation6 + $0x8] sm:$0xff]
    %v73 = vld [vmem:[#allocation6 + $0x10] sm:$0xff]
    %v74 = vld [vmem:[#allocation6 + $0x18] sm:$0xff]
    %v75 = vld [vmem:[%s2] sm:$0x1]
    %v77 = vlaneseq
    %v78 = vshrl.u32 %v77, 7
    %v79 = vsub.s32 0, %v78
    %v80 = vrot.slane %v75, %v79
    %vm82 = vcmask 261120
    %v84 = vsel %vm82, %v69, 0
    %v87 = vsel %vm82, %v70, 0
    %89 = vmatprep.subr.mxu0 0.0
    %90 = vmatpush1.msra.mxu0 0.0
    %91 = vmatprep.subr.mxu0 0.0
    %92 = vmatpush1.msra.mxu0 0.0
    %93 = vmatprep.subr.mxu0 0.0
    %94 = vmatpush1.msra.mxu0 0.0
    %95 = vmatprep.subr.mxu0 0.0
    %96 = vmatpush1.msra.mxu0 0.0
    %97 = vmatprep.subr.mxu0 0.0
    %98 = vmatpush1.msra.mxu0 0.0
    %99 = vmatprep.subr.mxu0 0.0
    %100 = vmatpush1.msra.mxu0 0.0
    %101 = vmatprep.subr.mxu0 0.0
    %102 = vmatpush1.msra.mxu0 0.0
    %103 = vmatprep.subr.mxu0 0.0
    %104 = vmatpush1.msra.mxu0 0.0
    %105 = vmatprep.subr.mxu0 0.0
    %106 = vmatpush1.msra.mxu0 0.0
    %107 = vmatprep.subr.mxu0 0.0
    %108 = vmatpush1.msra.mxu0 0.0
    %109 = vmatprep.subr.mxu0 0.0
    %110 = vmatpush1.msra.mxu0 0.0
    %111 = vmatprep.subr.mxu0 0.0
    %112 = vmatpush1.msra.mxu0 0.0
    %113 = vmatprep.subr.mxu0 0.0
    %114 = vmatpush1.msra.mxu0 %v74
    %115 = vmatprep.subr.mxu0 0.0
    %116 = vmatpush1.msra.mxu0 %v73
    %117 = vmatprep.subr.mxu0 0.0
    %118 = vmatpush1.msra.mxu0 %v72
    %119 = vmatprep.subr.mxu0 0.0
    %120 = vmatpush1.msra.mxu0 %v71
    %121 = vmatprep.subr.mxu0 0.0
    %122 = vmatpush2.msra.mxu0 0.0
    %123 = vmatprep.subr.mxu0 0.0
    %124 = vmatpush2.msra.mxu0 0.0
    %125 = vmatprep.subr.mxu0 0.0
    %126 = vmatpush2.msra.mxu0 0.0
    %127 = vmatprep.subr.mxu0 0.0
    %128 = vmatpush2.msra.mxu0 0.0
    %129 = vmatprep.subr.mxu0 0.0
    %130 = vmatpush2.msra.mxu0 0.0
    %131 = vmatprep.subr.mxu0 0.0
    %132 = vmatpush2.msra.mxu0 0.0
    %133 = vmatprep.subr.mxu0 0.0
    %134 = vmatpush2.msra.mxu0 0.0
    %135 = vmatprep.subr.mxu0 0.0
    %136 = vmatpush2.msra.mxu0 0.0
    %137 = vmatprep.subr.mxu0 0.0
    %138 = vmatpush2.msra.mxu0 0.0
    %139 = vmatprep.subr.mxu0 0.0
    %140 = vmatpush2.msra.mxu0 0.0
    %141 = vmatprep.subr.mxu0 0.0
    %142 = vmatpush2.msra.mxu0 0.0
    %143 = vmatprep.subr.mxu0 0.0
    %144 = vmatpush2.msra.mxu0 0.0
    %145 = vmatprep.subr.mxu0 0.0
    %146 = vmatpush2.msra.mxu0 0.0
    %147 = vmatprep.subr.mxu0 0.0
    %148 = vmatpush2.msra.mxu0 0.0
    %149 = vmatprep.subr.mxu0 0.0
    %150 = vmatpush2.msra.mxu0 0.0
    %151 = vmatprep.subr.mxu0 0.0
    %152 = vmatpush2.msra.mxu0 0.0
    %153 = vmatprep.mubr.f32.mxu0 0.0
    %154 = vmatmul.mubr.f32.gmra.mxu0 %v84
    %v155 = vpop.f32.mrf.mxu0
    %v156 = vadd.f32 %v80, %v155
    %v157 = vpop.f32.mrf.mxu0
    %158 = vmatprep.mubr.f32.mxu0 0.0
    %159 = vmatmul.mubr.f32.gmra.mxu0 %v87
    %v160 = vpop.f32.mrf.mxu0
    %v161 = vadd.f32 %v80, %v160
    %v162 = vpop.f32.mrf.mxu0
    %163 = vdwg.mxu0
    %v164 = vtanh.pop %v156
    %v165 = vtanh.pop %v161
    %v166 = vld [vmem:[#allocation8] sm:$0xff]
    %v167 = vld [vmem:[#allocation8 + $0x8] sm:$0xff]
    %v168 = vld [vmem:[#allocation8 + $0x10] sm:$0xff]
    %v169 = vld [vmem:[#allocation8 + $0x18] sm:$0xff]
    %v170 = vld [vmem:[#allocation8 + $0x20] sm:$0xff]
    %v171 = vld [vmem:[#allocation8 + $0x28] sm:$0xff]
    %v172 = vld [vmem:[#allocation8 + $0x30] sm:$0xff]
    %v173 = vld [vmem:[#allocation8 + $0x38] sm:$0xff]
    %v174 = vld [vmem:[#allocation8 + $0x40] sm:$0xff]
    %v175 = vld [vmem:[#allocation8 + $0x48] sm:$0xff]
    %v176 = vld [vmem:[#allocation8 + $0x50] sm:$0xff]
    %v177 = vld [vmem:[#allocation8 + $0x58] sm:$0xff]
    %v178 = vld [vmem:[#allocation8 + $0x60] sm:$0xff]
    %v179 = vld [vmem:[#allocation8 + $0x68] sm:$0xff]
    %v180 = vld [vmem:[#allocation8 + $0x70] sm:$0xff]
    %v181 = vld [vmem:[#allocation8 + $0x78] sm:$0xff]
    %v182 = vld [vmem:[%s4] sm:$0x1]
    %v184 = vlaneseq
    %v185 = vshrl.u32 %v184, 7
    %v186 = vsub.s32 0, %v185
    %v187 = vrot.slane %v182, %v186
    %189 = vmatprep.subr.mxu0 0.0
    %190 = vmatpush1.msra.mxu0 %v181
    %191 = vmatprep.subr.mxu0 0.0
    %192 = vmatpush1.msra.mxu0 %v180
    %193 = vmatprep.subr.mxu0 0.0
    %194 = vmatpush1.msra.mxu0 %v179
    %195 = vmatprep.subr.mxu0 0.0
    %196 = vmatpush1.msra.mxu0 %v178
    %197 = vmatprep.subr.mxu0 0.0
    %198 = vmatpush1.msra.mxu0 %v177
    %199 = vmatprep.subr.mxu0 0.0
    %200 = vmatpush1.msra.mxu0 %v176
    %201 = vmatprep.subr.mxu0 0.0
    %202 = vmatpush1.msra.mxu0 %v175
    %203 = vmatprep.subr.mxu0 0.0
    %204 = vmatpush1.msra.mxu0 %v174
    %205 = vmatprep.subr.mxu0 0.0
    %206 = vmatpush1.msra.mxu0 %v173
    %207 = vmatprep.subr.mxu0 0.0
    %208 = vmatpush1.msra.mxu0 %v172
    %209 = vmatprep.subr.mxu0 0.0
    %210 = vmatpush1.msra.mxu0 %v171
    %211 = vmatprep.subr.mxu0 0.0
    %212 = vmatpush1.msra.mxu0 %v170
    %213 = vmatprep.subr.mxu0 0.0
    %214 = vmatpush1.msra.mxu0 %v169
    %215 = vmatprep.subr.mxu0 0.0
    %216 = vmatpush1.msra.mxu0 %v168
    %217 = vmatprep.subr.mxu0 0.0
    %218 = vmatpush1.msra.mxu0 %v167
    %219 = vmatprep.subr.mxu0 0.0
    %220 = vmatpush1.msra.mxu0 %v166
    %221 = vmatprep.subr.mxu0 0.0
    %222 = vmatpush2.msra.mxu0 0.0
    %223 = vmatprep.subr.mxu0 0.0
    %224 = vmatpush2.msra.mxu0 0.0
    %225 = vmatprep.subr.mxu0 0.0
    %226 = vmatpush2.msra.mxu0 0.0
    %227 = vmatprep.subr.mxu0 0.0
    %228 = vmatpush2.msra.mxu0 0.0
    %229 = vmatprep.subr.mxu0 0.0
    %230 = vmatpush2.msra.mxu0 0.0
    %231 = vmatprep.subr.mxu0 0.0
    %232 = vmatpush2.msra.mxu0 0.0
    %233 = vmatprep.subr.mxu0 0.0
    %234 = vmatpush2.msra.mxu0 0.0
    %235 = vmatprep.subr.mxu0 0.0
    %236 = vmatpush2.msra.mxu0 0.0
    %237 = vmatprep.subr.mxu0 0.0
    %238 = vmatpush2.msra.mxu0 0.0
    %239 = vmatprep.subr.mxu0 0.0
    %240 = vmatpush2.msra.mxu0 0.0
    %241 = vmatprep.subr.mxu0 0.0
    %242 = vmatpush2.msra.mxu0 0.0
    %243 = vmatprep.subr.mxu0 0.0
    %244 = vmatpush2.msra.mxu0 0.0
    %245 = vmatprep.subr.mxu0 0.0
    %246 = vmatpush2.msra.mxu0 0.0
    %247 = vmatprep.subr.mxu0 0.0
    %248 = vmatpush2.msra.mxu0 0.0
    %249 = vmatprep.subr.mxu0 0.0
    %250 = vmatpush2.msra.mxu0 0.0
    %251 = vmatprep.subr.mxu0 0.0
    %252 = vmatpush2.msra.mxu0 0.0
    %253 = vmatprep.mubr.f32.mxu0 0.0
    %254 = vmatmul.mubr.f32.gmra.mxu0 %v164
    %v255 = vpop.f32.mrf.mxu0
    %v256 = vadd.f32 %v187, %v255
    %v257 = vpop.f32.mrf.mxu0
    %258 = vmatprep.mubr.f32.mxu0 0.0
    %259 = vmatmul.mubr.f32.gmra.mxu0 %v165
    %v260 = vpop.f32.mrf.mxu0
    %v261 = vadd.f32 %v187, %v260
    %v262 = vpop.f32.mrf.mxu0
    %263 = vdwg.mxu0
    %v264 = vtanh.pop %v256
    %v265 = vtanh.pop %v261
    %v266 = vld [vmem:[%s5] sm:$0x1]
    %s267 = sld [smem:[#allocation2]]
    %v268 = vstv %s267
    %269 = vmatprep.subr.mxu0 0.0
    %270 = vmatpush1.xpose.msra.mxu0 0.0
    %271 = vmatprep.subr.mxu0 0.0
    %272 = vmatpush1.xpose.msra.mxu0 0.0
    %273 = vmatprep.subr.mxu0 0.0
    %274 = vmatpush1.xpose.msra.mxu0 0.0
    %275 = vmatprep.subr.mxu0 0.0
    %276 = vmatpush1.xpose.msra.mxu0 0.0
    %277 = vmatprep.subr.mxu0 0.0
    %278 = vmatpush1.xpose.msra.mxu0 0.0
    %279 = vmatprep.subr.mxu0 0.0
    %280 = vmatpush1.xpose.msra.mxu0 0.0
    %281 = vmatprep.subr.mxu0 0.0
    %282 = vmatpush1.xpose.msra.mxu0 0.0
    %283 = vmatprep.subr.mxu0 0.0
    %284 = vmatpush1.xpose.msra.mxu0 0.0
    %285 = vmatprep.subr.mxu0 0.0
    %286 = vmatpush1.xpose.msra.mxu0 0.0
    %287 = vmatprep.subr.mxu0 0.0
    %288 = vmatpush1.xpose.msra.mxu0 0.0
    %289 = vmatprep.subr.mxu0 0.0
    %290 = vmatpush1.xpose.msra.mxu0 0.0
    %291 = vmatprep.subr.mxu0 0.0
    %292 = vmatpush1.xpose.msra.mxu0 0.0
    %293 = vmatprep.subr.mxu0 0.0
    %294 = vmatpush1.xpose.msra.mxu0 0.0
    %295 = vmatprep.subr.mxu0 0.0
    %296 = vmatpush1.xpose.msra.mxu0 0.0
    %297 = vmatprep.subr.mxu0 0.0
    %298 = vmatpush1.xpose.msra.mxu0 %v265
    %299 = vmatprep.subr.mxu0 0.0
    %300 = vmatpush1.xpose.msra.mxu0 %v264
    %301 = vmatprep.subr.mxu0 0.0
    %302 = vmatpush2.xpose.msra.mxu0 0.0
    %303 = vmatprep.subr.mxu0 0.0
    %304 = vmatpush2.xpose.msra.mxu0 0.0
    %305 = vmatprep.subr.mxu0 0.0
    %306 = vmatpush2.xpose.msra.mxu0 0.0
    %307 = vmatprep.subr.mxu0 0.0
    %308 = vmatpush2.xpose.msra.mxu0 0.0
    %309 = vmatprep.subr.mxu0 0.0
    %310 = vmatpush2.xpose.msra.mxu0 0.0
    %311 = vmatprep.subr.mxu0 0.0
    %312 = vmatpush2.xpose.msra.mxu0 0.0
    %313 = vmatprep.subr.mxu0 0.0
    %314 = vmatpush2.xpose.msra.mxu0 0.0
    %315 = vmatprep.subr.mxu0 0.0
    %316 = vmatpush2.xpose.msra.mxu0 0.0
    %317 = vmatprep.subr.mxu0 0.0
    %318 = vmatpush2.xpose.msra.mxu0 0.0
    %319 = vmatprep.subr.mxu0 0.0
    %320 = vmatpush2.xpose.msra.mxu0 0.0
    %321 = vmatprep.subr.mxu0 0.0
    %322 = vmatpush2.xpose.msra.mxu0 0.0
    %323 = vmatprep.subr.mxu0 0.0
    %324 = vmatpush2.xpose.msra.mxu0 0.0
    %325 = vmatprep.subr.mxu0 0.0
    %326 = vmatpush2.xpose.msra.mxu0 0.0
    %327 = vmatprep.subr.mxu0 0.0
    %328 = vmatpush2.xpose.msra.mxu0 0.0
    %329 = vmatprep.subr.mxu0 0.0
    %330 = vmatpush2.xpose.msra.mxu0 0.0
    %331 = vmatprep.subr.mxu0 0.0
    %332 = vmatpush2.xpose.msra.mxu0 0.0
    %333 = vmatprep.mubr.f32.mxu0 0.0
    %334 = vmatmul.mubr.f32.gmra.mxu0 %v266
    %v335 = vpop.f32.mrf.mxu0
    %v336 = vadd.f32 %v268, %v335
    %v337 = vpop.f32.mrf.mxu0
    %338 = vdwg.mxu0
    %v339 = vxor.u32 %v336, 2147483648
    %v340 = vmul.f32 %v339, 1.442695
    %v341 = vpow.pop %v340
    %v342 = vadd.f32 %v341, 1.0
    %v343 = vrcp.pop %v342
    %v344 = vmul.f32 1.0, %v343
    %vm345 = vcmask 122880
    %346 = vst.msk [vmem:[#allocation9] sm:$0x1] %vm345, %v344
    // Predicated region
    $region42: #{tpu_custom_call.1} parent=1 // pred_check
      _
    $region43: #{tpu_custom_call.1} parent=1 // pred_check_branch
      %348 = sbr.rel (0) target = $region45
    $region44: #{tpu_custom_call.1} parent=1 // pred_region
      %s350 = ssub.s32 16, 16
      %351 = vsyncadd [#allocation5], %s350
      %s353 = sshll.u32 [#allocation9], 4
      %s354 = int_to_ptr.vmem [resolvable:$true] %s353
      %356 = dma.vmem_to_hbm [thread:$0]  %s354, 16, %s7, [#allocation5]
    $region45: #{tpu_custom_call.1} parent=1 // pred_fallthru
      _
    // Predicated region
    $region46: #{tpu_custom_call.1} parent=1 // pred_check
      _
    $region47: #{tpu_custom_call.1} parent=1 // pred_check_branch
      %358 = sbr.rel (0) target = $region49
    $region48: #{tpu_custom_call.1} parent=1 // pred_region
      %359 = dma.done [#allocation5], 16
    $region49: #{tpu_custom_call.1} parent=1 // pred_fallthru
      _
    %360 = vsyncpa [#allocation4], 1
    %361 = vsyncpa [#allocation7], 1
    %362 = vsyncpa [#allocation5], 1

</llo_original>
